<compile_context>
chip_gen: v6e
topology: v6e:2x2x1
jax: 0.10.0
libtpu: 0.0.40
codegen_flags: <defaults>
</compile_context>

<pallas_src>
import functools
import math

import numpy as np
import jax
import jax.numpy as jnp
from jax import lax
from jax.experimental import pallas as pl
from jax.experimental.pallas import tpu as pltpu

ALPHA_LIM = (float(np.exp(-1 / 5)), float(np.exp(-1 / 25)))
BETA_LIM = (float(np.exp(-1 / 30)), float(np.exp(-1 / 120)))
A_LIM = (-1.0, 1.0)
B_LIM = (0.0, 2.0)
BN_EPS = 1e-5

VMEM_LIMIT = 32 * 1024 * 1024    # compiler scoped-VMEM limit (below v7x's 64 MiB physical)
VMEM_BUDGET = 24 * 1024 * 1024   # target per-kernel working set (leaves headroom)


def _round_up(x, m):
    return (x + m - 1) // m * m


def _pick_time_block(T, max_tb):
    """Timesteps per grid step: minimize (grid steps + wasted padded serial steps)."""
    max_tb = int(max(1, min(max_tb, T)))
    best_tb, best_cost = 1, None
    for tb in range(1, max_tb + 1):
        nblk = -(-T // tb)
        cost = nblk + (nblk * tb - T)
        if best_cost is None or cost < best_cost or (cost == best_cost and tb > best_tb):
            best_tb, best_cost = tb, cost
    return best_tb


def _pick_row_tile(R, tm_base, I, Hp, in_bytes, wx_bytes):
    """Row tile for kernel 1: as large as possible (<=1024), divides R, fits VMEM."""
    fixed = 2 * I * Hp * in_bytes + 4 * Hp * 4           # resident W^T (x2 bufs) + stats
    per_row = 2 * (I * in_bytes + Hp * wx_bytes)         # double-buffered x row + wx row
    cap = max(8, (VMEM_BUDGET - fixed) // per_row)
    target = int(min(1024, cap))
    if tm_base <= target:
        nb = R // tm_base
        m = 1
        for d in range(1, nb + 1):
            if nb % d == 0 and tm_base * d <= target:
                m = d
        return tm_base * m
    best = 8
    d = 8
    while d <= min(tm_base, target):
        if tm_base % d == 0:
            best = d
        d += 8
    return best


# ---------- Kernel 1: Wx = x2d @ W^T (bf16 MXU), fused BN column sum / sum-sq ----------

def _wx_stats_kernel(x_ref, wt_ref, wx_ref, sum_ref, ssq_ref):
    wx = jnp.dot(x_ref[...], wt_ref[...], preferred_element_type=jnp.float32)
    wx_ref[...] = wx.astype(wx_ref.dtype)

    @pl.when(pl.program_id(0) == 0)
    def _():
        sum_ref[...] = jnp.zeros_like(sum_ref)
        ssq_ref[...] = jnp.zeros_like(ssq_ref)

    sum_ref[...] += jnp.sum(wx, axis=0, keepdims=True)
    ssq_ref[...] += jnp.sum(wx * wx, axis=0, keepdims=True)


# ---------- Kernel 2: RadLIF recurrence, time-major, Tb timesteps per grid step ----------

def _radlif_cell_kernel(wx_ref, v_ref, p_ref, s0_ref, s_ref,
                        ut_sc, wt_sc, st_sc, wxn_sc, *, tb, threshold, unroll):
    # Fresh state at the start of each batch tile's time sweep.
    @pl.when(pl.program_id(1) == 0)
    def _():
        ut_sc[...] = s0_ref[0]
        wt_sc[...] = s0_ref[1]
        st_sc[...] = s0_ref[2]

    # Per-feature parameters kept as (1, Hp) rows (implicit broadcast keeps
    # vreg pressure low inside the unrolled loop).
    alpha = p_ref[0:1, :]
    om_alpha = p_ref[1:2, :]     # 1 - alpha (precomputed)
    beta = p_ref[2:3, :]
    a = p_ref[3:4, :]
    b = p_ref[4:5, :]
    bn_scale = p_ref[5:6, :]
    bn_shift = p_ref[6:7, :]

    v = v_ref[...]               # (Hp, Hp) bf16, constant across the grid

    # Folded BatchNorm affine applied once on the whole (Tb, Bb, Hp) block,
    # hoisted off the serial per-step dependency chain.
    wxn_sc[...] = wx_ref[...].astype(jnp.float32) * bn_scale + bn_shift

    def step(i, carry):
        ut, wt, st = carry
        reset = st
        wt = beta * wt + a * ut + b * reset
        rec = jnp.dot(st.astype(v.dtype), v, preferred_element_type=jnp.float32)
        ut = alpha * (ut - reset) + om_alpha * (wxn_sc[i] + rec - wt)
        st = ((ut - threshold) > 0.0).astype(jnp.float32)
        s_ref[i] = st            # dense (8,128)-aligned store (time-major layout)
        return ut, wt, st

    ut, wt, st = lax.fori_loop(0, tb, step,
                               (ut_sc[...], wt_sc[...], st_sc[...]),
                               unroll=unroll)

    ut_sc[...] = ut
    wt_sc[...] = wt
    st_sc[...] = st


def radlif_forward(x, W, V, alpha, beta, a, b, ut0, wt0, st0, *,
                   threshold=1.0, use_bf16_matmul=True):
    """x: (B, T, I) float32. Returns spikes s: (B, T, H) float32."""
    B, T, I = x.shape
    H = W.shape[0]
    f32 = jnp.float32
    mm_dtype = jnp.bfloat16 if use_bf16_matmul else f32
    mm_bytes = 2 if use_bf16_matmul else 4

    Hp = _round_up(H, 128)       # lane-dense feature dim
    Bp = _round_up(B, 8)         # sublane-dense batch dim (time-major layout)

    # Batch tile: single tile on 1-TC parts; split only when large enough that
    # per-step MXU efficiency is unhurt (lets v7x shard batch across its 2 TCs).
    Bb = Bp // 2 if (Bp >= 256 and (Bp // 2) % 8 == 0) else Bp

    # Time block from an explicit VMEM budget (v7x physical VMEM is 64 MiB).
    per_t = Bb * Hp * (2 * mm_bytes + 2 * 4 + 4)   # wx in (x2) + spikes out (x2) + bn'd wx scratch
    fixed = (2 * Hp * Hp * mm_bytes                # resident V (double-buffered)
             + 2 * 8 * Hp * 4                      # packed params
             + 2 * 3 * Bb * Hp * 4                 # initial state
             + 3 * Bb * Hp * 4)                    # ut/wt/st carry scratch
    Tb = _pick_time_block(T, (VMEM_BUDGET - fixed) // per_t)
    nT = -(-T // Tb)
    Tp = nT * Tb

    # ---- parameter prep (tiny, XLA) ----
    alpha_c = jnp.clip(alpha.astype(f32), *ALPHA_LIM)
    beta_c = jnp.clip(beta.astype(f32), *BETA_LIM)
    a_c = jnp.clip(a.astype(f32), *A_LIM)
    b_c = jnp.clip(b.astype(f32), *B_LIM)

    pad_h = (0, Hp - H)
    V0 = V.astype(f32) * (1.0 - jnp.eye(H, dtype=f32))                # fill_diagonal_(0)
    V0 = jnp.pad(V0, (pad_h, pad_h)).astype(mm_dtype)                 # (Hp, Hp)
    Wt = jnp.pad(W.astype(f32).T, ((0, 0), pad_h)).astype(mm_dtype)   # (I, Hp)

    # ---- time-major input: (T, B, I) -> padded (Tp, Bp, I) -> (R, I) ----
    x_tm = jnp.transpose(x.astype(f32), (1, 0, 2))
    x_tm = jnp.pad(x_tm, ((0, Tp - T), (0, Bp - B), (0, 0)))          # zero rows: inert
    R = Tp * Bp
    x2d = x_tm.reshape(R, I).astype(mm_dtype)

    tm = _pick_row_tile(R, Tb * Bp, I, Hp, mm_bytes, mm_bytes)

    # ---- Kernel 1: row-tiled Wx (bf16 MXU / bf16 storage) + global BN stats ----
    wx2d, col_sum, col_ssq = pl.pallas_call(
        _wx_stats_kernel,
        grid_spec=pltpu.PrefetchScalarGridSpec(
            num_scalar_prefetch=0,
            grid=(R // tm,),
            in_specs=[
                pl.BlockSpec((tm, I), lambda i: (i, 0)),     # x row tile
                pl.BlockSpec((I, Hp), lambda i: (0, 0)),     # W^T (resident)
            ],
            out_specs=[
                pl.BlockSpec((tm, Hp), lambda i: (i, 0)),    # Wx (bf16)
                pl.BlockSpec((1, Hp), lambda i: (0, 0)),     # column sum (accumulator)
                pl.BlockSpec((1, Hp), lambda i: (0, 0)),     # column sum-of-squares
            ],
        ),
        out_shape=(
            jax.ShapeDtypeStruct((R, Hp), mm_dtype),
            jax.ShapeDtypeStruct((1, Hp), f32),
            jax.ShapeDtypeStruct((1, Hp), f32),
        ),
        compiler_params=pltpu.CompilerParams(
            dimension_semantics=("arbitrary",),              # stats accumulate across tiles
            vmem_limit_bytes=VMEM_LIMIT,
        ),
    )(x2d, Wt)

    # BatchNorm1d (training-mode batch stats, biased variance, gamma=1/beta=0)
    # folded into an affine. Padded rows are all-zero so they contribute 0;
    # divide by the real sample count.
    n_rows = float(B * T)
    mean = col_sum / n_rows
    var = col_ssq / n_rows - mean * mean
    bn_scale = lax.rsqrt(var + BN_EPS)
    bn_shift = -mean * bn_scale

    params = jnp.stack([
        jnp.pad(alpha_c, pad_h),
        jnp.pad(1.0 - alpha_c, pad_h),
        jnp.pad(beta_c, pad_h),
        jnp.pad(a_c, pad_h),
        jnp.pad(b_c, pad_h),
        bn_scale[0],
        bn_shift[0],
        jnp.zeros((Hp,), f32),
    ], axis=0)                                               # (8, Hp) packed params

    pad_bh = ((0, Bp - B), pad_h)
    state0 = jnp.stack([
        jnp.pad(ut0.astype(f32), pad_bh),
        jnp.pad(wt0.astype(f32), pad_bh),
        jnp.pad(st0.astype(f32), pad_bh),
    ], axis=0)                                               # (3, Bp, Hp)

    wx3d = wx2d.reshape(Tp, Bp, Hp)                          # free reshape, time-major

    unroll = int(min(Tb, 8))
    flops = int(Tp) * (2 * Bp * Hp * Hp + 12 * Bp * Hp)
    bytes_accessed = (mm_bytes * Tp * Bp * Hp + 4 * Tp * Bp * Hp
                      + mm_bytes * Hp * Hp + 4 * (8 * Hp + 3 * Bp * Hp))

    # ---- Kernel 2: recurrent cell over (batch tile, time block) grid ----
    s_pad = pl.pallas_call(
        functools.partial(_radlif_cell_kernel, tb=Tb,
                          threshold=float(threshold), unroll=unroll),
        grid_spec=pltpu.PrefetchScalarGridSpec(
            num_scalar_prefetch=0,
            grid=(Bp // Bb, Tp // Tb),
            in_specs=[
                pl.BlockSpec((Tb, Bb, Hp), lambda bi, ti: (ti, bi, 0)),  # Wx block
                pl.BlockSpec((Hp, Hp), lambda bi, ti: (0, 0)),           # V (resident)
                pl.BlockSpec((8, Hp), lambda bi, ti: (0, 0)),            # packed params
                pl.BlockSpec((3, Bb, Hp), lambda bi, ti: (0, bi, 0)),    # initial state
            ],
            out_specs=pl.BlockSpec((Tb, Bb, Hp), lambda bi, ti: (ti, bi, 0)),
            scratch_shapes=[pltpu.VMEM((Bb, Hp), f32),       # ut carry
                            pltpu.VMEM((Bb, Hp), f32),       # wt carry
                            pltpu.VMEM((Bb, Hp), f32),       # st carry
                            pltpu.VMEM((Tb, Bb, Hp), f32)],  # BN-normalized Wx block
        ),
        out_shape=jax.ShapeDtypeStruct((Tp, Bp, Hp), f32),
        compiler_params=pltpu.CompilerParams(
            dimension_semantics=("parallel", "arbitrary"),   # batch independent; time serial
            vmem_limit_bytes=VMEM_LIMIT,
        ),
        cost_estimate=pl.CostEstimate(flops=int(flops), transcendentals=0,
                                      bytes_accessed=int(bytes_accessed)),
    )(wx3d, V0, params, state0)

    # (Tp, Bp, Hp) time-major -> (B, T, H); drop batch/time/feature padding.
    return jnp.transpose(s_pad[:T, :B, :H], (1, 0, 2))


if __name__ == "__main__":
    B, T, I, H = 2, 8, 32, 32

    key = jax.random.PRNGKey(0)
    keys = jax.random.split(key, 10)

    x = jax.random.normal(keys[0], (B, T, I), jnp.float32)

    # Parameters (deterministic synthetic init mirroring the PyTorch __init__ shapes).
    bound = 1.0 / math.sqrt(I)
    W = jax.random.uniform(keys[1], (H, I), jnp.float32, -bound, bound)   # nn.Linear weight
    V = jax.nn.initializers.orthogonal()(keys[2], (H, H), jnp.float32)    # orthogonal_
    alpha = jax.random.uniform(keys[3], (H,), jnp.float32, *ALPHA_LIM)
    beta = jax.random.uniform(keys[4], (H,), jnp.float32, *BETA_LIM)
    a = jax.random.uniform(keys[5], (H,), jnp.float32, *A_LIM)
    b = jax.random.uniform(keys[6], (H,), jnp.float32, *B_LIM)

    # Random initial state (torch.rand equivalents; st0 non-binary as in the reference).
    ut0 = jax.random.uniform(keys[7], (B, H), jnp.float32)
    wt0 = jax.random.uniform(keys[8], (B, H), jnp.float32)
    st0 = jax.random.uniform(keys[9], (B, H), jnp.float32)

    s = radlif_forward(x, W, V, alpha, beta, a, b, ut0, wt0, st0, threshold=1.0)
    s = jax.block_until_ready(s)
    assert s.shape == (B, T, H) and s.dtype == jnp.float32
    assert bool(jnp.all((s == 0.0) | (s == 1.0)))
    print("KERNEL_OK")
</pallas_src>

<mosaic_0001>
module attributes {stable_mosaic.version = 11 : i64} {
  func.func @_wx_stats_kernel(%arg0: i32, %arg1: memref<64x32xbf16, #tpu.memory_space<vmem>>, %arg2: memref<32x128xbf16, #tpu.memory_space<vmem>>, %arg3: memref<64x128xbf16, #tpu.memory_space<vmem>>, %arg4: memref<1x128xf32, #tpu.memory_space<vmem>>, %arg5: memref<1x128xf32, #tpu.memory_space<vmem>>) attributes {dimension_semantics = [#tpu.dimension_semantics<arbitrary>], iteration_bounds = array<i64: 1>, scalar_prefetch = 0 : i64, scratch_operands = 0 : i64, tpu.core_type = #tpu.core_type<tc>, window_params = [{transform_indices = @transform_0, window_bounds = array<i64: 64, 32>}, {pipeline_mode = #tpu.pipeline_mode<synchronous>, transform_indices = @transform_1, window_bounds = array<i64: 32, 128>}, {transform_indices = @transform_2, window_bounds = array<i64: 64, 128>}, {pipeline_mode = #tpu.pipeline_mode<synchronous>, transform_indices = @transform_3, window_bounds = array<i64: 1, 128>}, {pipeline_mode = #tpu.pipeline_mode<synchronous>, transform_indices = @transform_4, window_bounds = array<i64: 1, 128>}]} {
    %c0 = arith.constant 0 : index
    %c0_0 = arith.constant 0 : index
    %0 = vector.load %arg1[%c0, %c0_0] : memref<64x32xbf16, #tpu.memory_space<vmem>>, vector<64x32xbf16>
    %c0_1 = arith.constant 0 : index
    %c0_2 = arith.constant 0 : index
    %1 = vector.load %arg2[%c0_1, %c0_2] : memref<32x128xbf16, #tpu.memory_space<vmem>>, vector<32x128xbf16>
    %cst = arith.constant dense<0.000000e+00> : vector<64x128xf32>
    %2 = tpu.matmul %0, %1, %cst {dimension_numbers = #tpu.dot_dimension_numbers<[1], [0], [0], [1], [0, 0, 1, 1], [], []>} : vector<64x32xbf16>, vector<32x128xbf16>, vector<64x128xf32> -> vector<64x128xf32>
    %3 = arith.truncf %2 : vector<64x128xf32> to vector<64x128xbf16>
    %c0_3 = arith.constant 0 : index
    %c0_4 = arith.constant 0 : index
    %4 = vector.load %arg3[%c0_3, %c0_4] : memref<64x128xbf16, #tpu.memory_space<vmem>>, vector<64x128xbf16>
    tpu.vector_store %arg3[%c0_3, %c0_4], %3 {strides = array<i32>} : memref<64x128xbf16, #tpu.memory_space<vmem>>, vector<64x128xbf16>,
    %c0_i32 = arith.constant 0 : i32
    %5 = arith.cmpi eq, %arg0, %c0_i32 : i32
    %6 = arith.extui %5 : i1 to i32
    %c0_i32_5 = arith.constant 0 : i32
    %7 = arith.cmpi ne, %6, %c0_i32_5 : i32
    scf.if %7 {
      %cst_16 = arith.constant 0.000000e+00 : f32
      %19 = vector.broadcast %cst_16 : f32 to vector<1x128xf32>
      %c0_17 = arith.constant 0 : index
      %c0_18 = arith.constant 0 : index
      %20 = vector.load %arg4[%c0_17, %c0_18] : memref<1x128xf32, #tpu.memory_space<vmem>>, vector<1x128xf32>
      tpu.vector_store %arg4[%c0_17, %c0_18], %19 {strides = array<i32>} : memref<1x128xf32, #tpu.memory_space<vmem>>, vector<1x128xf32>,
      %cst_19 = arith.constant 0.000000e+00 : f32
      %21 = vector.broadcast %cst_19 : f32 to vector<1x128xf32>
      %c0_20 = arith.constant 0 : index
      %c0_21 = arith.constant 0 : index
      %22 = vector.load %arg5[%c0_20, %c0_21] : memref<1x128xf32, #tpu.memory_space<vmem>>, vector<1x128xf32>
      tpu.vector_store %arg5[%c0_20, %c0_21], %21 {strides = array<i32>} : memref<1x128xf32, #tpu.memory_space<vmem>>, vector<1x128xf32>,
    } else {
    }
    %c0_6 = arith.constant 0 : index
    %c0_7 = arith.constant 0 : index
    %8 = vector.load %arg4[%c0_6, %c0_7] : memref<1x128xf32, #tpu.memory_space<vmem>>, vector<1x128xf32>
    %cst_8 = arith.constant dense<0.000000e+00> : vector<128xf32>
    %9 = vector.multi_reduction <add>, %2, %cst_8 [0] : vector<64x128xf32> to vector<128xf32>
    %10 = vector.shape_cast %9 : vector<128xf32> to vector<1x128xf32>
    %11 = arith.addf %8, %10 : vector<1x128xf32>
    %c0_9 = arith.constant 0 : index
    %c0_10 = arith.constant 0 : index
    %12 = vector.load %arg4[%c0_9, %c0_10] : memref<1x128xf32, #tpu.memory_space<vmem>>, vector<1x128xf32>
    tpu.vector_store %arg4[%c0_9, %c0_10], %11 {strides = array<i32>} : memref<1x128xf32, #tpu.memory_space<vmem>>, vector<1x128xf32>,
    %c0_11 = arith.constant 0 : index
    %c0_12 = arith.constant 0 : index
    %13 = vector.load %arg5[%c0_11, %c0_12] : memref<1x128xf32, #tpu.memory_space<vmem>>, vector<1x128xf32>
    %14 = arith.mulf %2, %2 : vector<64x128xf32>
    %cst_13 = arith.constant dense<0.000000e+00> : vector<128xf32>
    %15 = vector.multi_reduction <add>, %14, %cst_13 [0] : vector<64x128xf32> to vector<128xf32>
    %16 = vector.shape_cast %15 : vector<128xf32> to vector<1x128xf32>
    %17 = arith.addf %13, %16 : vector<1x128xf32>
    %c0_14 = arith.constant 0 : index
    %c0_15 = arith.constant 0 : index
    %18 = vector.load %arg5[%c0_14, %c0_15] : memref<1x128xf32, #tpu.memory_space<vmem>>, vector<1x128xf32>
    tpu.vector_store %arg5[%c0_14, %c0_15], %17 {strides = array<i32>} : memref<1x128xf32, #tpu.memory_space<vmem>>, vector<1x128xf32>,
    return
  }
  func.func @transform_0(%arg0: i32) -> (i32, i32) {
    %c0_i32 = arith.constant 0 : i32
    %c0_i32_0 = arith.constant 0 : i32
    return %arg0, %c0_i32 : i32, i32
  }
  func.func @transform_1(%arg0: i32) -> (i32, i32) {
    %c0_i32 = arith.constant 0 : i32
    %c0_i32_0 = arith.constant 0 : i32
    %c0_i32_1 = arith.constant 0 : i32
    return %c0_i32, %c0_i32_0 : i32, i32
  }
  func.func @transform_2(%arg0: i32) -> (i32, i32) {
    %c0_i32 = arith.constant 0 : i32
    %c0_i32_0 = arith.constant 0 : i32
    return %arg0, %c0_i32 : i32, i32
  }
  func.func @transform_3(%arg0: i32) -> (i32, i32) {
    %c0_i32 = arith.constant 0 : i32
    %c0_i32_0 = arith.constant 0 : i32
    %c0_i32_1 = arith.constant 0 : i32
    return %c0_i32, %c0_i32_0 : i32, i32
  }
  func.func @transform_4(%arg0: i32) -> (i32, i32) {
    %c0_i32 = arith.constant 0 : i32
    %c0_i32_0 = arith.constant 0 : i32
    %c0_i32_1 = arith.constant 0 : i32
    return %c0_i32, %c0_i32_0 : i32, i32
  }
}

</mosaic_0001>

<llo_original>
// kernel: tpu_custom_call.1
$region0: #{tpu_custom_call.1}
  #allocation0 [shape = 'u32[]', space=smem, size = 0x4, offset = 0x4, fixed_abs, tag = 'smem constant byte address 0x4 - core index']
  #allocation1 [shape = 'u32[144,128]{1,0:T(1,128)}', space=vmem, size = 0x12000, scoped, tag = 'internal scratch']
  %s0 = inlined_call_operand.vmem [shape: bf16[64,32], index: 0, kind: input, shape index: {}]
  %s1 = inlined_call_operand.vmem [shape: bf16[32,128], index: 1, kind: input, shape index: {}]
  %s2 = inlined_call_operand.hbm [shape: bf16[64,128], index: 2, kind: output, shape index: {0}]
  %s3 = inlined_call_operand.hbm [shape: f32[1,128], index: 3, kind: output, shape index: {1}]
  %s4 = inlined_call_operand.hbm [shape: f32[1,128], index: 4, kind: output, shape index: {2}]
  %5 = xla_tuple %s2, %s3, %s4
  %s6 = sld [smem:[#allocation0]]
  $region38: #{tpu_custom_call.1} parent=0
    _
  %s8 = ssub.s32 1, %s6
  %s9 = scalar_select 0, %s8, %s6
  $region1: #{tpu_custom_call.1} parent=0
    #allocation2 [shape = 'u8[16384]{0}', space=vmem, size = 0x4000, scoped, tag = 'output window, operand 0, single buffered']
    #allocation3 [shape = 's32[1]{0}', space=sflag, size = 0x4, scoped, tag = 'scoped memory for tpu_custom_call.1']
    #allocation4 [shape = 'u8[512]{0}', space=vmem, size = 0x400, scoped, tag = 'output window, operand 1, single buffered']
    #allocation5 [shape = 's32[1]{0}', space=sflag, size = 0x4, scoped, tag = 'scoped memory for tpu_custom_call.1']
    #allocation6 [shape = 'u8[512]{0}', space=vmem, size = 0x400, scoped, tag = 'output window, operand 2, single buffered']
    %10 = vsyncpa [#allocation3], 0
    %11 = vsyncpa [#allocation5], 0
    // Predicated region
    $region2: #{tpu_custom_call.1} parent=1 // pred_check
      _
    $region3: #{tpu_custom_call.1} parent=1 // pred_check_branch
      %13 = sbr.rel (0) target = $region5
    $region4: #{tpu_custom_call.1} parent=1 // pred_region
      _
    $region5: #{tpu_custom_call.1} parent=1 // pred_fallthru
      _
    // Predicated region
    $region6: #{tpu_custom_call.1} parent=1 // pred_check
      _
    $region7: #{tpu_custom_call.1} parent=1 // pred_check_branch
      %15 = sbr.rel (0) target = $region9
    $region8: #{tpu_custom_call.1} parent=1 // pred_region
      _
    $region9: #{tpu_custom_call.1} parent=1 // pred_fallthru
      _
    %v17 = vld [vmem:[%s0] sm:$0xf]
    %v18 = vld [vmem:[%s0 + $0x4] sm:$0xf]
    %v19 = vld [vmem:[%s0 + $0x8] sm:$0xf]
    %v20 = vld [vmem:[%s0 + $0xc] sm:$0xf]
    %v21 = vld [vmem:[%s0 + $0x10] sm:$0xf]
    %v22 = vld [vmem:[%s0 + $0x14] sm:$0xf]
    %v23 = vld [vmem:[%s0 + $0x18] sm:$0xf]
    %v24 = vld [vmem:[%s0 + $0x1c] sm:$0xf]
    %v25 = vld [vmem:[%s1] sm:$0xf]
    %v26 = vld [vmem:[%s1 + $0x4] sm:$0xf]
    %v27 = vld [vmem:[%s1 + $0x8] sm:$0xf]
    %v28 = vld [vmem:[%s1 + $0xc] sm:$0xf]
    %v37 = vunpack.c.l.b16 %v17
    %v38 = vunpack.c.l.b16 %v18
    %v39 = vunpack.c.l.b16 %v19
    %v40 = vunpack.c.l.b16 %v20
    %v41 = vunpack.c.l.b16 %v21
    %v42 = vunpack.c.l.b16 %v22
    %v43 = vunpack.c.l.b16 %v23
    %v44 = vunpack.c.l.b16 %v24
    %v45 = vpack.c.b16 %v38, %v37
    %v46 = vpack.c.b16 %v40, %v39
    %v47 = vpack.c.b16 %v42, %v41
    %v48 = vpack.c.b16 %v44, %v43
    %v53 = vunpack.c.l.b16 %v25
    %v54 = vunpack.c.l.b16 %v26
    %v55 = vunpack.c.l.b16 %v27
    %v56 = vunpack.c.l.b16 %v28
    %v57 = vpack.c.b16 %v54, %v53
    %v58 = vpack.c.b16 %v56, %v55
    %vm61 = vcmask 261120
    %v63 = vsel %vm61, %v45, 0
    %v66 = vsel %vm61, %v46, 0
    %v69 = vsel %vm61, %v47, 0
    %v72 = vsel %vm61, %v48, 0
    %74 = vmatprep.subr.bf16.mxu0 0
    %75 = vmatpush1.bf16.msra.mxu0 0
    %76 = vmatprep.subr.bf16.mxu0 0
    %77 = vmatpush1.bf16.msra.mxu0 0
    %78 = vmatprep.subr.bf16.mxu0 0
    %79 = vmatpush1.bf16.msra.mxu0 0
    %80 = vmatprep.subr.bf16.mxu0 0
    %81 = vmatpush1.bf16.msra.mxu0 0
    %82 = vmatprep.subr.bf16.mxu0 0
    %83 = vmatpush1.bf16.msra.mxu0 0
    %84 = vmatprep.subr.bf16.mxu0 0
    %85 = vmatpush1.bf16.msra.mxu0 0
    %86 = vmatprep.subr.bf16.mxu0 0
    %87 = vmatpush1.bf16.msra.mxu0 %v58
    %88 = vmatprep.subr.bf16.mxu0 0
    %89 = vmatpush1.bf16.msra.mxu0 %v57
    %90 = vmatprep.subr.bf16.mxu0 0
    %91 = vmatpush2.bf16.msra.mxu0 0
    %92 = vmatprep.subr.bf16.mxu0 0
    %93 = vmatpush2.bf16.msra.mxu0 0
    %94 = vmatprep.subr.bf16.mxu0 0
    %95 = vmatpush2.bf16.msra.mxu0 0
    %96 = vmatprep.subr.bf16.mxu0 0
    %97 = vmatpush2.bf16.msra.mxu0 0
    %98 = vmatprep.subr.bf16.mxu0 0
    %99 = vmatpush2.bf16.msra.mxu0 0
    %100 = vmatprep.subr.bf16.mxu0 0
    %101 = vmatpush2.bf16.msra.mxu0 0
    %102 = vmatprep.subr.bf16.mxu0 0
    %103 = vmatpush2.bf16.msra.mxu0 0
    %104 = vmatprep.subr.bf16.mxu0 0
    %105 = vmatpush2.bf16.msra.mxu0 0
    %106 = vmatprep.mubr.bf16.mxu0 0
    %107 = vmatmul.mubr.bf16.gmra.mxu0 %v63
    %v108 = vpop.f32.mrf.mxu0
    %v109 = vadd.f32 0.0, %v108
    %v110 = vpop.f32.mrf.mxu0
    %v111 = vpop.f32.mrf.mxu0
    %v112 = vadd.f32 0.0, %v111
    %v113 = vpop.f32.mrf.mxu0
    %114 = vmatprep.mubr.bf16.mxu0 0
    %115 = vmatmul.mubr.bf16.gmra.mxu0 %v66
    %v116 = vpop.f32.mrf.mxu0
    %v117 = vadd.f32 0.0, %v116
    %v118 = vpop.f32.mrf.mxu0
    %v119 = vpop.f32.mrf.mxu0
    %v120 = vadd.f32 0.0, %v119
    %v121 = vpop.f32.mrf.mxu0
    %122 = vmatprep.mubr.bf16.mxu0 0
    %123 = vmatmul.mubr.bf16.gmra.mxu0 %v69
    %v124 = vpop.f32.mrf.mxu0
    %v125 = vadd.f32 0.0, %v124
    %v126 = vpop.f32.mrf.mxu0
    %v127 = vpop.f32.mrf.mxu0
    %v128 = vadd.f32 0.0, %v127
    %v129 = vpop.f32.mrf.mxu0
    %130 = vmatprep.mubr.bf16.mxu0 0
    %131 = vmatmul.mubr.bf16.gmra.mxu0 %v72
    %v132 = vpop.f32.mrf.mxu0
    %v133 = vadd.f32 0.0, %v132
    %v134 = vpop.f32.mrf.mxu0
    %v135 = vpop.f32.mrf.mxu0
    %v136 = vadd.f32 0.0, %v135
    %v137 = vpop.f32.mrf.mxu0
    %138 = vdwg.mxu0
    %v139 = vpack.c.bf16 %v112, %v109
    %v140 = vpack.c.bf16 %v120, %v117
    %v141 = vpack.c.bf16 %v128, %v125
    %v142 = vpack.c.bf16 %v136, %v133
    %v147 = vunpack.c.l.b16 %v139
    %v148 = vunpack.c.h.b16 %v139
    %v149 = vunpack.c.l.b16 %v140
    %v150 = vunpack.c.h.b16 %v140
    %v151 = vunpack.c.l.b16 %v141
    %v152 = vunpack.c.h.b16 %v141
    %v153 = vunpack.c.l.b16 %v142
    %v154 = vunpack.c.h.b16 %v142
    %v155 = vpack.c.b16 %v147, %v147
    %v156 = vpack.c.b16 %v148, %v148
    %v157 = vpack.c.b16 %v149, %v149
    %v158 = vpack.c.b16 %v150, %v150
    %v159 = vpack.c.b16 %v151, %v151
    %v160 = vpack.c.b16 %v152, %v152
    %v161 = vpack.c.b16 %v153, %v153
    %v162 = vpack.c.b16 %v154, %v154
    %171 = vst [vmem:[#allocation2] sm:$0xf] %v155
    %172 = vst [vmem:[#allocation2 + $0x4] sm:$0xf] %v156
    %173 = vst [vmem:[#allocation2 + $0x8] sm:$0xf] %v157
    %174 = vst [vmem:[#allocation2 + $0xc] sm:$0xf] %v158
    %175 = vst [vmem:[#allocation2 + $0x10] sm:$0xf] %v159
    %176 = vst [vmem:[#allocation2 + $0x14] sm:$0xf] %v160
    %177 = vst [vmem:[#allocation2 + $0x18] sm:$0xf] %v161
    %178 = vst [vmem:[#allocation2 + $0x1c] sm:$0xf] %v162
    %p179 = scmp.eq.s32.totalorder 0, 0
    // Predicated region
    $region10: #{tpu_custom_call.1} parent=1 // pred_check
      %p180 = pneg %p179
    $region11: #{tpu_custom_call.1} parent=1 // pred_check_branch
      %182 = sbr.rel (%p180) target = $region13
    $region12: #{tpu_custom_call.1} parent=1 // pred_region
      %183 = vst [vmem:[#allocation4] sm:$0x1] 0.0
      %184 = vst [vmem:[#allocation6] sm:$0x1] 0.0
    $region13: #{tpu_custom_call.1} parent=1 // pred_fallthru
      _
    %v185 = vld [vmem:[#allocation4] sm:$0x1]
    %v186 = vadd.f32 %v109, %v112
    %v187 = vadd.f32 %v186, %v117
    %v188 = vadd.f32 %v187, %v120
    %v189 = vadd.f32 %v188, %v125
    %v190 = vadd.f32 %v189, %v128
    %v191 = vadd.f32 %v190, %v133
    %v192 = vadd.f32 %v191, %v136
    %v193 = vrot.slane %v192, 4
    %v194 = vadd.f32 %v192, %v193
    %v195 = vrot.slane %v194, 2
    %v196 = vadd.f32 %v194, %v195
    %v197 = vrot.slane %v196, 1
    %v198 = vadd.f32 %v196, %v197
    %v199 = vadd.f32 %v185, %v198
    %200 = vst [vmem:[#allocation4] sm:$0x1] %v199
    %v201 = vld [vmem:[#allocation6] sm:$0x1]
    %v202 = vmul.f32 %v109, %v109
    %v203 = vmul.f32 %v112, %v112
    %v204 = vmul.f32 %v117, %v117
    %v205 = vmul.f32 %v120, %v120
    %v206 = vmul.f32 %v125, %v125
    %v207 = vmul.f32 %v128, %v128
    %v208 = vmul.f32 %v133, %v133
    %v209 = vmul.f32 %v136, %v136
    %v210 = vadd.f32 %v202, %v203
    %v211 = vadd.f32 %v210, %v204
    %v212 = vadd.f32 %v211, %v205
    %v213 = vadd.f32 %v212, %v206
    %v214 = vadd.f32 %v213, %v207
    %v215 = vadd.f32 %v214, %v208
    %v216 = vadd.f32 %v215, %v209
    %v217 = vrot.slane %v216, 4
    %v218 = vadd.f32 %v216, %v217
    %v219 = vrot.slane %v218, 2
    %v220 = vadd.f32 %v218, %v219
    %v221 = vrot.slane %v220, 1
    %v222 = vadd.f32 %v220, %v221
    %v223 = vadd.f32 %v201, %v222
    %224 = vst [vmem:[#allocation6] sm:$0x1] %v223
    // Predicated region
    $region14: #{tpu_custom_call.1} parent=1 // pred_check
      _
    $region15: #{tpu_custom_call.1} parent=1 // pred_check_branch
      %226 = sbr.rel (0) target = $region17
    $region16: #{tpu_custom_call.1} parent=1 // pred_region
      %s228 = ssub.s32 512, 512
      %229 = vsyncadd [#allocation3], %s228
      %s230 = sshll.u32 [#allocation2], 4
      %s231 = int_to_ptr.vmem [resolvable:$true] %s230
      %236 = dma.vmem_to_hbm [thread:$0]  %s231, 512, %s2, [#allocation3], 64, 64, 4
    $region17: #{tpu_custom_call.1} parent=1 // pred_fallthru
      _
    // Predicated region
    $region18: #{tpu_custom_call.1} parent=1 // pred_check
      _
    $region19: #{tpu_custom_call.1} parent=1 // pred_check_branch
      %238 = sbr.rel (0) target = $region21
    $region20: #{tpu_custom_call.1} parent=1 // pred_region
      %s240 = ssub.s32 16, 16
      %241 = vsyncadd [#allocation5], %s240
      %s243 = sshll.u32 [#allocation4], 4
      %s244 = int_to_ptr.vmem [resolvable:$true] %s243
      %246 = dma.vmem_to_hbm [thread:$0]  %s244, 16, %s3, [#allocation5]
    $region21: #{tpu_custom_call.1} parent=1 // pred_fallthru
      _
    // Predicated region
    $region22: #{tpu_custom_call.1} parent=1 // pred_check
      _
    $region23: #{tpu_custom_call.1} parent=1 // pred_check_branch
      %248 = sbr.rel (0) target = $region25
    $region24: #{tpu_custom_call.1} parent=1 // pred_region
      %s250 = ssub.s32 16, 16
      %251 = vsyncadd [#allocation5], %s250
      %s253 = sshll.u32 [#allocation6], 4
      %s254 = int_to_ptr.vmem [resolvable:$true] %s253
      %256 = dma.vmem_to_hbm [thread:$0]  %s254, 16, %s4, [#allocation5]
    $region25: #{tpu_custom_call.1} parent=1 // pred_fallthru
      _
    // Predicated region
    $region26: #{tpu_custom_call.1} parent=1 // pred_check
      _
    $region27: #{tpu_custom_call.1} parent=1 // pred_check_branch
      %258 = sbr.rel (0) target = $region29
    $region28: #{tpu_custom_call.1} parent=1 // pred_region
      %259 = dma.done [#allocation3], 512
    $region29: #{tpu_custom_call.1} parent=1 // pred_fallthru
      _
    // Predicated region
    $region30: #{tpu_custom_call.1} parent=1 // pred_check
      _
    $region31: #{tpu_custom_call.1} parent=1 // pred_check_branch
      %261 = sbr.rel (0) target = $region33
    $region32: #{tpu_custom_call.1} parent=1 // pred_region
      %262 = dma.done [#allocation5], 16
    $region33: #{tpu_custom_call.1} parent=1 // pred_fallthru
      _
    // Predicated region
    $region34: #{tpu_custom_call.1} parent=1 // pred_check
      _
    $region35: #{tpu_custom_call.1} parent=1 // pred_check_branch
      %264 = sbr.rel (0) target = $region37
    $region36: #{tpu_custom_call.1} parent=1 // pred_region
      %265 = dma.done [#allocation5], 16
    $region37: #{tpu_custom_call.1} parent=1 // pred_fallthru
      _
    %266 = vsyncpa [#allocation3], 1
    %267 = vsyncpa [#allocation5], 1

</llo_original>
